<compile_context>
chip_gen: v6e
topology: v6e:2x2x1
jax: 0.10.0
libtpu: 0.0.40
codegen_flags: <defaults>
</compile_context>

<pallas_src>
import jax
import jax.numpy as jnp
from jax.experimental import pallas as pl
from jax.experimental.pallas import tpu as pltpu


def beta_intersection_kernel(alpha_ref, beta_ref, w1ta_ref, w1tb_ref, b1_ref,
                             w2t_ref, b2_ref, out_ref):
    # alpha_ref / beta_ref : (N, TB, D) f32 input tiles
    # w1ta_ref / w1tb_ref  : (D, 2D) bf16  (w1.T split in half along rows)
    # b1_ref               : (1, 2D) f32
    # w2t_ref              : (2D, D) bf16
    # b2_ref               : (1, D)  f32
    # out_ref              : (TB, 2D) f32  (alpha_out | beta_out)
    alpha = alpha_ref[...]
    beta = beta_ref[...]
    n, tb, d = alpha.shape

    a2d = alpha.reshape(n * tb, d)
    b2d = beta.reshape(n * tb, d)

    # layer 1: split matmul (avoids a lane-axis concat), bf16 operands,
    # f32 MXU accumulation.
    h = (jnp.dot(a2d.astype(jnp.bfloat16), w1ta_ref[...],
                 preferred_element_type=jnp.float32)
         + jnp.dot(b2d.astype(jnp.bfloat16), w1tb_ref[...],
                   preferred_element_type=jnp.float32)
         + b1_ref[...])
    h = jnp.maximum(h, 0.0)                                  # (N*TB, 2D) f32

    # layer 2: attention logits.
    logits = (jnp.dot(h.astype(jnp.bfloat16), w2t_ref[...],
                      preferred_element_type=jnp.float32)
              + b2_ref[...]).reshape(n, tb, d)               # (N, TB, D)

    # numerically-stable softmax over the N (conjunct) axis; reciprocal on EUP.
    m = jnp.max(logits, axis=0, keepdims=True)
    e = jnp.exp(logits - m)
    att = e * pl.reciprocal(jnp.sum(e, axis=0, keepdims=True), approx=True)

    # attention-weighted reductions over N, written as one lane-dense tile.
    a_out = jnp.sum(att * alpha, axis=0)                     # (TB, D) f32
    b_out = jnp.sum(att * beta, axis=0)                      # (TB, D) f32
    out_ref[...] = jnp.concatenate([a_out, b_out], axis=-1).astype(out_ref.dtype)


def _default_tb(B, N):
    """Pick a batch tile: multiple of 8 dividing B, grid >= 2 when possible,
    and N*tb small enough that double-buffered tiles + f32 intermediates stay
    comfortably under the 16 MiB v5e scoped-VMEM default."""
    if B <= 8 or B % 8 != 0:
        return B                      # tiny / awkward batch: single step
    cap = min(B // 2, max(8, 2048 // max(N, 1)))   # grid >= 2, N*tb <= ~2048 rows
    cap = max(8, (cap // 8) * 8)
    best = 8
    t = 8
    while t <= cap:
        if B % t == 0:
            best = t
        t += 8
    return best


def beta_intersection(alpha_embeddings, beta_embeddings, layers, *, tb=None):
    """alpha/beta: (N, B, D) f32; layers: (3*D + 2, 2*D) f32.

    Returns (alpha_out, beta_out), each (B, D)."""
    N, B, D = alpha_embeddings.shape
    assert beta_embeddings.shape == (N, B, D)
    assert layers.shape == (3 * D + 2, 2 * D)

    # Parameter slicing / transposition is glue: done in plain JAX.
    w1 = layers[: 2 * D]                              # (2D, 2D)
    w2 = layers[2 * D: 3 * D]                         # (D, 2D)
    b1 = layers[3 * D].reshape(1, 2 * D)              # (1, 2D)
    b2 = layers[3 * D + 1].reshape(2, -1)[0].reshape(1, D)   # (1, D)

    w1t = w1.T                                        # (2D, 2D)
    # Split w1.T so the kernel never concatenates along lanes:
    #   cat([a,b],-1) @ w1.T == a @ w1t[:D] + b @ w1t[D:]
    w1t_a = w1t[:D].astype(jnp.bfloat16)              # (D, 2D)
    w1t_b = w1t[D:].astype(jnp.bfloat16)              # (D, 2D)
    w2t = w2.T.astype(jnp.bfloat16)                   # (2D, D)

    if tb is None:
        tb = _default_tb(B, N)
    assert B % tb == 0, "tb must divide B"
    assert tb % 8 == 0 or tb == B, "(8,128) sublane constraint on batch tile"
    grid = (B // tb,)

    out = pl.pallas_call(
        beta_intersection_kernel,
        out_shape=jax.ShapeDtypeStruct((B, 2 * D), alpha_embeddings.dtype),
        grid_spec=pltpu.PrefetchScalarGridSpec(
            num_scalar_prefetch=0,
            grid=grid,
            in_specs=[
                pl.BlockSpec((N, tb, D), lambda i: (0, i, 0)),     # alpha tile
                pl.BlockSpec((N, tb, D), lambda i: (0, i, 0)),     # beta tile
                pl.BlockSpec((D, 2 * D), lambda i: (0, 0)),        # w1^T[:D]  (resident)
                pl.BlockSpec((D, 2 * D), lambda i: (0, 0)),        # w1^T[D:]  (resident)
                pl.BlockSpec((1, 2 * D), lambda i: (0, 0)),        # b1
                pl.BlockSpec((2 * D, D), lambda i: (0, 0)),        # w2^T      (resident)
                pl.BlockSpec((1, D), lambda i: (0, 0)),            # b2
            ],
            out_specs=pl.BlockSpec((tb, 2 * D), lambda i: (i, 0)), # combined output
        ),
        compiler_params=pltpu.CompilerParams(
            dimension_semantics=("parallel",),
        ),
    )(alpha_embeddings, beta_embeddings, w1t_a, w1t_b, b1, w2t, b2)

    return out[:, :D], out[:, D:]


def beta_intersection_ref(alpha, beta, layers):
    """Plain-JAX f32 reference mirroring the PyTorch forward (norm_mode='None')."""
    D = alpha.shape[-1]
    w1 = layers[: 2 * D]
    w2 = layers[2 * D: 3 * D]
    b1 = layers[3 * D]
    b2 = layers[3 * D + 1].reshape(2, -1)[0]
    all_emb = jnp.concatenate([alpha, beta], axis=-1)
    h = jax.nn.relu(all_emb @ w1.T + b1)
    att = jax.nn.softmax(h @ w2.T + b2, axis=0)
    return jnp.sum(att * alpha, axis=0), jnp.sum(att * beta, axis=0)


def beta_intersection_ref_bf16(alpha, beta, layers):
    """Reference with the same bf16 matmul-operand rounding as the kernel."""
    D = alpha.shape[-1]
    w1 = layers[: 2 * D]
    w2 = layers[2 * D: 3 * D]
    b1 = layers[3 * D]
    b2 = layers[3 * D + 1].reshape(2, -1)[0]
    x = jnp.concatenate([alpha, beta], axis=-1).astype(jnp.bfloat16)
    h = jax.nn.relu(jnp.dot(x, w1.T.astype(jnp.bfloat16),
                            preferred_element_type=jnp.float32) + b1)
    logits = jnp.dot(h.astype(jnp.bfloat16), w2.T.astype(jnp.bfloat16),
                     preferred_element_type=jnp.float32) + b2
    att = jax.nn.softmax(logits, axis=0)
    return jnp.sum(att * alpha, axis=0), jnp.sum(att * beta, axis=0)


def init_layers(key, dim):
    """Deterministic synthetic init matching the module's __init__:
    layers = zeros((3*dim + 2, 2*dim)); xavier_uniform on layers[:3*dim]."""
    rows, cols = 3 * dim + 2, 2 * dim
    fan_out, fan_in = 3 * dim, 2 * dim            # torch xavier on the sliced view
    bound = jnp.sqrt(6.0 / (fan_in + fan_out))
    w = jax.random.uniform(key, (3 * dim, cols), jnp.float32, -bound, bound)
    layers = jnp.zeros((rows, cols), jnp.float32)
    layers = layers.at[: 3 * dim].set(w)
    return layers


if __name__ == "__main__":
    dim = 64          # embedding dim D (combined output lane width = 2D = 128)
    num_conj = 4      # N: number of embeddings being intersected (softmax axis)
    batch = 16        # B (tb=8 -> grid of 2: pipelining / both v7x TCs exercised)

    key = jax.random.PRNGKey(0)
    k_layers, k_alpha, k_beta = jax.random.split(key, 3)

    layers = init_layers(k_layers, dim)
    # Beta-distribution params are strictly positive in the original model.
    alpha = jax.random.uniform(k_alpha, (num_conj, batch, dim), jnp.float32, 0.05, 2.0)
    beta = jax.random.uniform(k_beta, (num_conj, batch, dim), jnp.float32, 0.05, 2.0)

    a_out, b_out = beta_intersection(alpha, beta, layers)
    jax.block_until_ready((a_out, b_out))

    assert a_out.shape == (batch, dim) and b_out.shape == (batch, dim)

    # Tight check against a reference with matching bf16 operand rounding.
    a_refq, b_refq = beta_intersection_ref_bf16(alpha, beta, layers)
    assert jnp.allclose(a_out, a_refq, atol=1e-2, rtol=1e-2)
    assert jnp.allclose(b_out, b_refq, atol=1e-2, rtol=1e-2)

    # Loose check against the full-f32 PyTorch-equivalent reference.
    a_ref, b_ref = beta_intersection_ref(alpha, beta, layers)
    assert jnp.allclose(a_out, a_ref, atol=5e-2, rtol=5e-2)
    assert jnp.allclose(b_out, b_ref, atol=5e-2, rtol=5e-2)

    print("KERNEL_OK")
</pallas_src>

<mosaic_0001>
module attributes {stable_mosaic.version = 11 : i64} {
  func.func @beta_intersection_kernel(%arg0: i32, %arg1: memref<4x8x64xf32, #tpu.memory_space<vmem>>, %arg2: memref<4x8x64xf32, #tpu.memory_space<vmem>>, %arg3: memref<64x128xbf16, #tpu.memory_space<vmem>>, %arg4: memref<64x128xbf16, #tpu.memory_space<vmem>>, %arg5: memref<1x128xf32, #tpu.memory_space<vmem>>, %arg6: memref<128x64xbf16, #tpu.memory_space<vmem>>, %arg7: memref<1x64xf32, #tpu.memory_space<vmem>>, %arg8: memref<8x128xf32, #tpu.memory_space<vmem>>) attributes {dimension_semantics = [#tpu.dimension_semantics<parallel>], iteration_bounds = array<i64: 2>, scalar_prefetch = 0 : i64, scratch_operands = 0 : i64, tpu.core_type = #tpu.core_type<tc>, window_params = [{transform_indices = @transform_0, window_bounds = array<i64: 4, 8, 64>}, {transform_indices = @transform_1, window_bounds = array<i64: 4, 8, 64>}, {pipeline_mode = #tpu.pipeline_mode<synchronous>, transform_indices = @transform_2, window_bounds = array<i64: 64, 128>}, {pipeline_mode = #tpu.pipeline_mode<synchronous>, transform_indices = @transform_3, window_bounds = array<i64: 64, 128>}, {pipeline_mode = #tpu.pipeline_mode<synchronous>, transform_indices = @transform_4, window_bounds = array<i64: 1, 128>}, {pipeline_mode = #tpu.pipeline_mode<synchronous>, transform_indices = @transform_5, window_bounds = array<i64: 128, 64>}, {pipeline_mode = #tpu.pipeline_mode<synchronous>, transform_indices = @transform_6, window_bounds = array<i64: 1, 64>}, {transform_indices = @transform_7, window_bounds = array<i64: 8, 128>}]} {
    %c0 = arith.constant 0 : index
    %c0_0 = arith.constant 0 : index
    %c0_1 = arith.constant 0 : index
    %0 = vector.load %arg1[%c0, %c0_0, %c0_1] : memref<4x8x64xf32, #tpu.memory_space<vmem>>, vector<4x8x64xf32>
    %c0_2 = arith.constant 0 : index
    %c0_3 = arith.constant 0 : index
    %c0_4 = arith.constant 0 : index
    %1 = vector.load %arg2[%c0_2, %c0_3, %c0_4] : memref<4x8x64xf32, #tpu.memory_space<vmem>>, vector<4x8x64xf32>
    %2 = vector.shape_cast %0 : vector<4x8x64xf32> to vector<32x64xf32>
    %3 = vector.shape_cast %1 : vector<4x8x64xf32> to vector<32x64xf32>
    %4 = arith.truncf %2 : vector<32x64xf32> to vector<32x64xbf16>
    %c0_5 = arith.constant 0 : index
    %c0_6 = arith.constant 0 : index
    %5 = vector.load %arg3[%c0_5, %c0_6] : memref<64x128xbf16, #tpu.memory_space<vmem>>, vector<64x128xbf16>
    %cst = arith.constant dense<0.000000e+00> : vector<32x128xf32>
    %6 = tpu.matmul %4, %5, %cst {dimension_numbers = #tpu.dot_dimension_numbers<[1], [0], [0], [1], [0, 0, 1, 1], [], []>} : vector<32x64xbf16>, vector<64x128xbf16>, vector<32x128xf32> -> vector<32x128xf32>
    %7 = arith.truncf %3 : vector<32x64xf32> to vector<32x64xbf16>
    %c0_7 = arith.constant 0 : index
    %c0_8 = arith.constant 0 : index
    %8 = vector.load %arg4[%c0_7, %c0_8] : memref<64x128xbf16, #tpu.memory_space<vmem>>, vector<64x128xbf16>
    %cst_9 = arith.constant dense<0.000000e+00> : vector<32x128xf32>
    %9 = tpu.matmul %7, %8, %cst_9 {dimension_numbers = #tpu.dot_dimension_numbers<[1], [0], [0], [1], [0, 0, 1, 1], [], []>} : vector<32x64xbf16>, vector<64x128xbf16>, vector<32x128xf32> -> vector<32x128xf32>
    %10 = arith.addf %6, %9 : vector<32x128xf32>
    %c0_10 = arith.constant 0 : index
    %c0_11 = arith.constant 0 : index
    %11 = vector.load %arg5[%c0_10, %c0_11] : memref<1x128xf32, #tpu.memory_space<vmem>>, vector<1x128xf32>
    %12 = vector.broadcast %11 : vector<1x128xf32> to vector<32x128xf32>
    %13 = arith.addf %10, %12 : vector<32x128xf32>
    %cst_12 = arith.constant 0.000000e+00 : f32
    %14 = vector.broadcast %cst_12 : f32 to vector<32x128xf32>
    %15 = arith.maximumf %13, %14 : vector<32x128xf32>
    %16 = arith.truncf %15 : vector<32x128xf32> to vector<32x128xbf16>
    %c0_13 = arith.constant 0 : index
    %c0_14 = arith.constant 0 : index
    %17 = vector.load %arg6[%c0_13, %c0_14] : memref<128x64xbf16, #tpu.memory_space<vmem>>, vector<128x64xbf16>
    %cst_15 = arith.constant dense<0.000000e+00> : vector<32x64xf32>
    %18 = tpu.matmul %16, %17, %cst_15 {dimension_numbers = #tpu.dot_dimension_numbers<[1], [0], [0], [1], [0, 0, 1, 1], [], []>} : vector<32x128xbf16>, vector<128x64xbf16>, vector<32x64xf32> -> vector<32x64xf32>
    %c0_16 = arith.constant 0 : index
    %c0_17 = arith.constant 0 : index
    %19 = vector.load %arg7[%c0_16, %c0_17] : memref<1x64xf32, #tpu.memory_space<vmem>>, vector<1x64xf32>
    %20 = vector.broadcast %19 : vector<1x64xf32> to vector<32x64xf32>
    %21 = arith.addf %18, %20 : vector<32x64xf32>
    %22 = vector.shape_cast %21 : vector<32x64xf32> to vector<4x8x64xf32>
    %cst_18 = arith.constant dense<0xFF800000> : vector<8x64xf32>
    %23 = vector.multi_reduction <maximumf>, %22, %cst_18 [0] : vector<4x8x64xf32> to vector<8x64xf32>
    %24 = vector.shape_cast %23 : vector<8x64xf32> to vector<1x8x64xf32>
    %25 = vector.broadcast %24 : vector<1x8x64xf32> to vector<4x8x64xf32>
    %26 = arith.subf %22, %25 : vector<4x8x64xf32>
    %27 = math.exp %26 : vector<4x8x64xf32>
    %cst_19 = arith.constant dense<0.000000e+00> : vector<8x64xf32>
    %28 = vector.multi_reduction <add>, %27, %cst_19 [0] : vector<4x8x64xf32> to vector<8x64xf32>
    %29 = vector.shape_cast %28 : vector<8x64xf32> to vector<1x8x64xf32>
    %30 = tpu.reciprocal %29 {approx = true} : vector<1x8x64xf32> -> vector<1x8x64xf32>
    %31 = vector.broadcast %30 : vector<1x8x64xf32> to vector<4x8x64xf32>
    %32 = arith.mulf %27, %31 : vector<4x8x64xf32>
    %33 = arith.mulf %32, %0 : vector<4x8x64xf32>
    %cst_20 = arith.constant dense<0.000000e+00> : vector<8x64xf32>
    %34 = vector.multi_reduction <add>, %33, %cst_20 [0] : vector<4x8x64xf32> to vector<8x64xf32>
    %35 = arith.mulf %32, %1 : vector<4x8x64xf32>
    %cst_21 = arith.constant dense<0.000000e+00> : vector<8x64xf32>
    %36 = vector.multi_reduction <add>, %35, %cst_21 [0] : vector<4x8x64xf32> to vector<8x64xf32>
    %37 = tpu.concatenate %34, %36 in 1 : vector<8x64xf32>, vector<8x64xf32> -> vector<8x128xf32>
    %c0_22 = arith.constant 0 : index
    %c0_23 = arith.constant 0 : index
    %38 = vector.load %arg8[%c0_22, %c0_23] : memref<8x128xf32, #tpu.memory_space<vmem>>, vector<8x128xf32>
    tpu.vector_store %arg8[%c0_22, %c0_23], %37 {strides = array<i32>} : memref<8x128xf32, #tpu.memory_space<vmem>>, vector<8x128xf32>,
    return
  }
  func.func @transform_0(%arg0: i32) -> (i32, i32, i32) {
    %c0_i32 = arith.constant 0 : i32
    %c0_i32_0 = arith.constant 0 : i32
    %c0_i32_1 = arith.constant 0 : i32
    return %c0_i32, %arg0, %c0_i32_0 : i32, i32, i32
  }
  func.func @transform_1(%arg0: i32) -> (i32, i32, i32) {
    %c0_i32 = arith.constant 0 : i32
    %c0_i32_0 = arith.constant 0 : i32
    %c0_i32_1 = arith.constant 0 : i32
    return %c0_i32, %arg0, %c0_i32_0 : i32, i32, i32
  }
  func.func @transform_2(%arg0: i32) -> (i32, i32) {
    %c0_i32 = arith.constant 0 : i32
    %c0_i32_0 = arith.constant 0 : i32
    %c0_i32_1 = arith.constant 0 : i32
    return %c0_i32, %c0_i32_0 : i32, i32
  }
  func.func @transform_3(%arg0: i32) -> (i32, i32) {
    %c0_i32 = arith.constant 0 : i32
    %c0_i32_0 = arith.constant 0 : i32
    %c0_i32_1 = arith.constant 0 : i32
    return %c0_i32, %c0_i32_0 : i32, i32
  }
  func.func @transform_4(%arg0: i32) -> (i32, i32) {
    %c0_i32 = arith.constant 0 : i32
    %c0_i32_0 = arith.constant 0 : i32
    %c0_i32_1 = arith.constant 0 : i32
    return %c0_i32, %c0_i32_0 : i32, i32
  }
  func.func @transform_5(%arg0: i32) -> (i32, i32) {
    %c0_i32 = arith.constant 0 : i32
    %c0_i32_0 = arith.constant 0 : i32
    %c0_i32_1 = arith.constant 0 : i32
    return %c0_i32, %c0_i32_0 : i32, i32
  }
  func.func @transform_6(%arg0: i32) -> (i32, i32) {
    %c0_i32 = arith.constant 0 : i32
    %c0_i32_0 = arith.constant 0 : i32
    %c0_i32_1 = arith.constant 0 : i32
    return %c0_i32, %c0_i32_0 : i32, i32
  }
  func.func @transform_7(%arg0: i32) -> (i32, i32) {
    %c0_i32 = arith.constant 0 : i32
    %c0_i32_0 = arith.constant 0 : i32
    return %arg0, %c0_i32 : i32, i32
  }
}

</mosaic_0001>

<llo_original>
// kernel: tpu_custom_call.1
$region0: #{tpu_custom_call.1}
  #allocation0 [shape = 'u32[]', space=smem, size = 0x4, offset = 0x4, fixed_abs, tag = 'smem constant byte address 0x4 - core index']
  #allocation1 [shape = 'u32[144,128]{1,0:T(1,128)}', space=vmem, size = 0x12000, scoped, tag = 'internal scratch']
  %s0 = inlined_call_operand.vmem [shape: f32[4,16,64], index: 0, kind: input, shape index: {}]
  %s1 = inlined_call_operand.hbm [shape: f32[4,16,64], index: 1, kind: input, shape index: {}]
  %s2 = inlined_call_operand.vmem [shape: bf16[64,128], index: 2, kind: input, shape index: {}]
  %s3 = inlined_call_operand.hbm [shape: bf16[64,128], index: 3, kind: input, shape index: {}]
  %s4 = inlined_call_operand.vmem [shape: f32[1,128], index: 4, kind: input, shape index: {}]
  %s5 = inlined_call_operand.vmem [shape: bf16[128,64], index: 5, kind: input, shape index: {}]
  %s6 = inlined_call_operand.vmem [shape: f32[1,64], index: 6, kind: input, shape index: {}]
  %s7 = inlined_call_operand.hbm [shape: f32[16,128], index: 7, kind: output, shape index: {}]
  %s8 = sld [smem:[#allocation0]]
  $region107: #{tpu_custom_call.1} parent=0
    _
  %s10 = ssub.s32 1, %s8
  %s11 = scalar_select 0, %s10, %s8
  $region1: #{tpu_custom_call.1} parent=0
    #allocation2 [shape = 'u8[32768]{0}', space=vmem, size = 0x8000, scoped, tag = 'input window, operand 0']
    #allocation3 [shape = 'u8[32768]{0}', space=vmem, size = 0x8000, scoped, tag = 'input window, operand 1']
    #allocation4 [shape = 's32[2]{0}', space=sflag, size = 0x8, scoped, tag = 'scoped memory for tpu_custom_call.1']
    #allocation5 [shape = 's32[2]{0}', space=sflag, size = 0x8, scoped, tag = 'scoped memory for tpu_custom_call.1']
    #allocation6 [shape = 'u8[16384]{0}', space=vmem, size = 0x4000, scoped, tag = 'input window, operand 3, single buffered']
    #allocation7 [shape = 's32[1]{0}', space=sflag, size = 0x4, scoped, tag = 'scoped memory for tpu_custom_call.1']
    #allocation8 [shape = 'u8[8192]{0}', space=vmem, size = 0x2000, scoped, tag = 'output window, operand 0']
    %12 = vsyncpa [#allocation4], 0
    %s13 = scalar_lea.sflag [#allocation4], 1
    %14 = vsyncpa %s13, 0
    %15 = vsyncpa [#allocation7], 0
    %16 = vsyncpa [#allocation5], 0
    %s17 = scalar_lea.sflag [#allocation5], 1
    %18 = vsyncpa %s17, 0
    loop: start=0, step=1, limit=4
    $region2: #{tpu_custom_call.1} parent=1 // loop_pre_header
      _
    $region3: #{tpu_custom_call.1} parent=1 // loop_header
      %s20 = sphi 0, %s24
      %p21 = scmp.ge.s32.totalorder %s20, 4
      %s30 = sphi 0, %s32
      %s33 = sphi 0, %s30
      %s34 = sphi 0, %s33
      %s50 = sphi 0, %s34
      %s56 = sphi 0, %s58
      %s59 = sphi 0, %s56
      %s60 = sphi 0, %s59
      %s76 = sphi 0, %s60
      %s80 = sphi 0, %s80
      %s82 = sphi 0, %s80
      %s83 = sphi 0, %s82
      %s97 = sphi 0, %s83
      %s101 = sphi 0, %s101
      %s103 = sphi 0, %s101
      %s104 = sphi 0, %s103
      %s118 = sphi 0, %s104
      %s122 = sphi 0, %s122
      %s124 = sphi 0, %s122
      %s125 = sphi 0, %s124
      %s139 = sphi 0, %s125
      %s143 = sphi 0, %s143
      %s145 = sphi 0, %s143
      %s146 = sphi 0, %s145
      %s160 = sphi 0, %s146
      %s164 = sphi 0, %s164
      %s166 = sphi 0, %s164
      %s167 = sphi 0, %s166
      %s181 = sphi 0, %s167
      %s187 = sphi 0, %s189
      %s190 = sphi 0, %s187
      %s191 = sphi 0, %s190
      %s207 = sphi 0, %s191
    $region4: #{tpu_custom_call.1} parent=1 // loop_header_branch
      %23 = sbr.rel (%p21) target = $region8
    $region5: #{tpu_custom_call.1} parent=1 // loop_body
      %s25 = ssub.s32 %s20, 1
      %s26 = ssub.s32 %s20, 2
      %s27 = sadd.s32 %s20, 1
      %s28 = ssub.s32 %s20, %s27
      %p29 = scmp.eq.s32.totalorder %s28, 0
      %s31 = sadd.s32 %s30, 1
      %s32 = scalar_select %p29, %s30, %s31
      %p35 = pneg %p29
      %p36 = scmp.eq.s32.totalorder %s20, 1
      %p37 = por %p35, %p36
      %p38 = scmp.ne.s32.totalorder %s30, %s33
      %p39 = scmp.eq.s32.totalorder %s20, 0
      %p40 = por %p38, %p39
      %p41 = scmp.ne.s32.totalorder %s30, %s33
      %p42 = scmp.eq.s32.totalorder %s25, 1
      %p43 = por %p41, %p42
      %p44 = scmp.ne.s32.totalorder %s33, %s34
      %p45 = scmp.eq.s32.totalorder %s25, 0
      %p46 = por %p44, %p45
      %p47 = scmp.ne.s32.totalorder %s33, %s34
      %p48 = scmp.eq.s32.totalorder %s26, 1
      %p49 = por %p47, %p48
      %p51 = scmp.ne.s32.totalorder %s34, %s50
      %p52 = scmp.eq.s32.totalorder %s26, 0
      %p53 = por %p51, %p52
      %s54 = ssub.s32 %s20, %s27
      %p55 = scmp.eq.s32.totalorder %s54, 0
      %s57 = sadd.s32 %s56, 1
      %s58 = scalar_select %p55, %s56, %s57
      %p61 = pneg %p55
      %p62 = scmp.eq.s32.totalorder %s20, 1
      %p63 = por %p61, %p62
      %p64 = scmp.ne.s32.totalorder %s56, %s59
      %p65 = scmp.eq.s32.totalorder %s20, 0
      %p66 = por %p64, %p65
      %p67 = scmp.ne.s32.totalorder %s56, %s59
      %p68 = scmp.eq.s32.totalorder %s25, 1
      %p69 = por %p67, %p68
      %p70 = scmp.ne.s32.totalorder %s59, %s60
      %p71 = scmp.eq.s32.totalorder %s25, 0
      %p72 = por %p70, %p71
      %p73 = scmp.ne.s32.totalorder %s59, %s60
      %p74 = scmp.eq.s32.totalorder %s26, 1
      %p75 = por %p73, %p74
      %p77 = scmp.ne.s32.totalorder %s60, %s76
      %p78 = scmp.eq.s32.totalorder %s26, 0
      %p79 = por %p77, %p78
      %s81 = sadd.s32 %s80, 1
      %p84 = scmp.eq.s32.totalorder %s20, 1
      %p85 = scmp.ne.s32.totalorder %s80, %s82
      %p86 = scmp.eq.s32.totalorder %s20, 0
      %p87 = por %p85, %p86
      %p88 = scmp.ne.s32.totalorder %s80, %s82
      %p89 = scmp.eq.s32.totalorder %s25, 1
      %p90 = por %p88, %p89
      %p91 = scmp.ne.s32.totalorder %s82, %s83
      %p92 = scmp.eq.s32.totalorder %s25, 0
      %p93 = por %p91, %p92
      %p94 = scmp.ne.s32.totalorder %s82, %s83
      %p95 = scmp.eq.s32.totalorder %s26, 1
      %p96 = por %p94, %p95
      %p98 = scmp.ne.s32.totalorder %s83, %s97
      %p99 = scmp.eq.s32.totalorder %s26, 0
      %p100 = por %p98, %p99
      %s102 = sadd.s32 %s101, 1
      %p105 = scmp.eq.s32.totalorder %s20, 1
      %p106 = scmp.ne.s32.totalorder %s101, %s103
      %p107 = scmp.eq.s32.totalorder %s20, 0
      %p108 = por %p106, %p107
      %p109 = scmp.ne.s32.totalorder %s101, %s103
      %p110 = scmp.eq.s32.totalorder %s25, 1
      %p111 = por %p109, %p110
      %p112 = scmp.ne.s32.totalorder %s103, %s104
      %p113 = scmp.eq.s32.totalorder %s25, 0
      %p114 = por %p112, %p113
      %p115 = scmp.ne.s32.totalorder %s103, %s104
      %p116 = scmp.eq.s32.totalorder %s26, 1
      %p117 = por %p115, %p116
      %p119 = scmp.ne.s32.totalorder %s104, %s118
      %p120 = scmp.eq.s32.totalorder %s26, 0
      %p121 = por %p119, %p120
      %s123 = sadd.s32 %s122, 1
      %p126 = scmp.eq.s32.totalorder %s20, 1
      %p127 = scmp.ne.s32.totalorder %s122, %s124
      %p128 = scmp.eq.s32.totalorder %s20, 0
      %p129 = por %p127, %p128
      %p130 = scmp.ne.s32.totalorder %s122, %s124
      %p131 = scmp.eq.s32.totalorder %s25, 1
      %p132 = por %p130, %p131
      %p133 = scmp.ne.s32.totalorder %s124, %s125
      %p134 = scmp.eq.s32.totalorder %s25, 0
      %p135 = por %p133, %p134
      %p136 = scmp.ne.s32.totalorder %s124, %s125
      %p137 = scmp.eq.s32.totalorder %s26, 1
      %p138 = por %p136, %p137
      %p140 = scmp.ne.s32.totalorder %s125, %s139
      %p141 = scmp.eq.s32.totalorder %s26, 0
      %p142 = por %p140, %p141
      %s144 = sadd.s32 %s143, 1
      %p147 = scmp.eq.s32.totalorder %s20, 1
      %p148 = scmp.ne.s32.totalorder %s143, %s145
      %p149 = scmp.eq.s32.totalorder %s20, 0
      %p150 = por %p148, %p149
      %p151 = scmp.ne.s32.totalorder %s143, %s145
      %p152 = scmp.eq.s32.totalorder %s25, 1
      %p153 = por %p151, %p152
      %p154 = scmp.ne.s32.totalorder %s145, %s146
      %p155 = scmp.eq.s32.totalorder %s25, 0
      %p156 = por %p154, %p155
      %p157 = scmp.ne.s32.totalorder %s145, %s146
      %p158 = scmp.eq.s32.totalorder %s26, 1
      %p159 = por %p157, %p158
      %p161 = scmp.ne.s32.totalorder %s146, %s160
      %p162 = scmp.eq.s32.totalorder %s26, 0
      %p163 = por %p161, %p162
      %s165 = sadd.s32 %s164, 1
      %p168 = scmp.eq.s32.totalorder %s20, 1
      %p169 = scmp.ne.s32.totalorder %s164, %s166
      %p170 = scmp.eq.s32.totalorder %s20, 0
      %p171 = por %p169, %p170
      %p172 = scmp.ne.s32.totalorder %s164, %s166
      %p173 = scmp.eq.s32.totalorder %s25, 1
      %p174 = por %p172, %p173
      %p175 = scmp.ne.s32.totalorder %s166, %s167
      %p176 = scmp.eq.s32.totalorder %s25, 0
      %p177 = por %p175, %p176
      %p178 = scmp.ne.s32.totalorder %s166, %s167
      %p179 = scmp.eq.s32.totalorder %s26, 1
      %p180 = por %p178, %p179
      %p182 = scmp.ne.s32.totalorder %s167, %s181
      %p183 = scmp.eq.s32.totalorder %s26, 0
      %p184 = por %p182, %p183
      %s185 = ssub.s32 %s20, %s27
      %p186 = scmp.eq.s32.totalorder %s185, 0
      %s188 = sadd.s32 %s187, 1
      %s189 = scalar_select %p186, %s187, %s188
      %p192 = pneg %p186
      %p193 = scmp.eq.s32.totalorder %s20, 1
      %p194 = por %p192, %p193
      %p195 = scmp.ne.s32.totalorder %s187, %s190
      %p196 = scmp.eq.s32.totalorder %s20, 0
      %p197 = por %p195, %p196
      %p198 = scmp.ne.s32.totalorder %s187, %s190
      %p199 = scmp.eq.s32.totalorder %s25, 1
      %p200 = por %p198, %p199
      %p201 = scmp.ne.s32.totalorder %s190, %s191
      %p202 = scmp.eq.s32.totalorder %s25, 0
      %p203 = por %p201, %p202
      %p204 = scmp.ne.s32.totalorder %s190, %s191
      %p205 = scmp.eq.s32.totalorder %s26, 1
      %p206 = por %p204, %p205
      %p208 = scmp.ne.s32.totalorder %s191, %s207
      %p209 = scmp.eq.s32.totalorder %s26, 0
      %p210 = por %p208, %p209
      %p211 = scmp.le.s32.totalorder 1, %s20
      %p212 = scmp.lt.s32.totalorder %s20, 3
      %p213 = pnand %p211, %p212
      %p214 = pneg %p213
      // Predicated region
      $region9: #{tpu_custom_call.1} parent=5 // pred_check
        _
      $region10: #{tpu_custom_call.1} parent=5 // pred_check_branch
        %216 = sbr.rel (%p213) target = $region12
      $region11: #{tpu_custom_call.1} parent=5 // pred_region
        %s217 = ssub.s32 %s20, 1
        // Predicated region
        $region13: #{tpu_custom_call.1} parent=11 // pred_check
          %p218 = pneg %p93
        $region14: #{tpu_custom_call.1} parent=11 // pred_check_branch
          %220 = sbr.rel (%p218) target = $region16
        $region15: #{tpu_custom_call.1} parent=11 // pred_region
          _
        $region16: #{tpu_custom_call.1} parent=11 // pred_fallthru
          _
        // Predicated region
        $region17: #{tpu_custom_call.1} parent=11 // pred_check
          %p221 = pneg %p114
        $region18: #{tpu_custom_call.1} parent=11 // pred_check_branch
          %223 = sbr.rel (%p221) target = $region20
        $region19: #{tpu_custom_call.1} parent=11 // pred_region
          %s225 = ssub.s32 512, 512
          %226 = vsyncadd [#allocation7], %s225
          %s227 = sshll.u32 [#allocation6], 4
          %s228 = int_to_ptr.vmem [resolvable:$true] %s227
          %233 = dma.hbm_to_vmem [thread:$0]  %s3, 512, %s228, [#allocation7], 64, 64, 4
        $region20: #{tpu_custom_call.1} parent=11 // pred_fallthru
          _
        // Predicated region
        $region21: #{tpu_custom_call.1} parent=11 // pred_check
          %p234 = pneg %p135
        $region22: #{tpu_custom_call.1} parent=11 // pred_check_branch
          %236 = sbr.rel (%p234) target = $region24
        $region23: #{tpu_custom_call.1} parent=11 // pred_region
          _
        $region24: #{tpu_custom_call.1} parent=11 // pred_fallthru
          _
        // Predicated region
        $region25: #{tpu_custom_call.1} parent=11 // pred_check
          %p237 = pneg %p156
        $region26: #{tpu_custom_call.1} parent=11 // pred_check_branch
          %239 = sbr.rel (%p237) target = $region28
        $region27: #{tpu_custom_call.1} parent=11 // pred_region
          _
        $region28: #{tpu_custom_call.1} parent=11 // pred_fallthru
          _
        // Predicated region
        $region29: #{tpu_custom_call.1} parent=11 // pred_check
          %p240 = pneg %p177
        $region30: #{tpu_custom_call.1} parent=11 // pred_check_branch
          %242 = sbr.rel (%p240) target = $region32
        $region31: #{tpu_custom_call.1} parent=11 // pred_region
          _
        $region32: #{tpu_custom_call.1} parent=11 // pred_fallthru
          _
      $region12: #{tpu_custom_call.1} parent=5 // pred_fallthru
        _
      %p243 = scmp.lt.s32.totalorder %s20, 2
      // Predicated region
      $region33: #{tpu_custom_call.1} parent=5 // pred_check
        %p244 = pneg %p243
      $region34: #{tpu_custom_call.1} parent=5 // pred_check_branch
        %246 = sbr.rel (%p244) target = $region36
      $region35: #{tpu_custom_call.1} parent=5 // pred_region
        // Predicated region
        $region37: #{tpu_custom_call.1} parent=35 // pred_check
          %p247 = pneg %p40
        $region38: #{tpu_custom_call.1} parent=35 // pred_check_branch
          %249 = sbr.rel (%p247) target = $region40
        $region39: #{tpu_custom_call.1} parent=35 // pred_region
          %s250 = sand.u32 %s30, 1
          %s251 = sand.u32 %s30, 1
          %s252 = smul.addr %s251, 32
          %s253 = scalar_lea.vmem [#allocation2], %s252
          %s254 = smul.addr %s20, 8
          %s255 = scalar_lea.vmem %s0, %s254
          // Predicated region
          $region41: #{tpu_custom_call.1} parent=39 // pred_check
            _
          $region42: #{tpu_custom_call.1} parent=39 // pred_check_branch
            %257 = sbr.rel (0) target = $region44
          $region43: #{tpu_custom_call.1} parent=39 // pred_region
            // Predicated region
            $region45: #{tpu_custom_call.1} parent=43 // pred_check
              _
            $region46: #{tpu_custom_call.1} parent=43 // pred_check_branch
              %259 = sbr.rel (0) target = $region48
            $region47: #{tpu_custom_call.1} parent=43 // pred_region
              // Predicated region
              $region60: #{tpu_custom_call.1} parent=47 // pred_check
                _
              $region61: #{tpu_custom_call.1} parent=47 // pred_check_branch
                %281 = sbr.rel (0) target = $region63
              $region62: #{tpu_custom_call.1} parent=47 // pred_region
                loop: start=0, step=1, limit=1
                $region64: #{tpu_custom_call.1} parent=62 // loop_pre_header
                  _
                $region65: #{tpu_custom_call.1} parent=62 // loop_header
                  %s283 = sphi 0, %s287
                  %p284 = scmp.ge.s32.totalorder %s283, 1
                  %s288 = sphi %s255, %s255
                  %s289 = sphi %s253, %s253
                $region66: #{tpu_custom_call.1} parent=62 // loop_header_branch
                  %286 = sbr.rel (%p284) target = $region70
                $region67: #{tpu_custom_call.1} parent=62 // loop_body
                  %v290 = vld [vmem:[%s288] sm:$0xff]
                  %291 = vst [vmem:[%s289] sm:$0xff] %v290
                  %v292 = vld [vmem:[%s288 + $0x10] sm:$0xff]
                  %293 = vst [vmem:[%s289 + $0x8] sm:$0xff] %v292
                  %v294 = vld [vmem:[%s288 + $0x20] sm:$0xff]
                  %295 = vst [vmem:[%s289 + $0x10] sm:$0xff] %v294
                  %v296 = vld [vmem:[%s288 + $0x30] sm:$0xff]
                  %297 = vst [vmem:[%s289 + $0x18] sm:$0xff] %v296
                $region68: #{tpu_custom_call.1} parent=62 // loop_footer
                  %s287 = sadd.s32 1, %s283
                $region69: #{tpu_custom_call.1} parent=62 // loop_footer_branch
                  %282 = sbr.rel target = $region65
                $region70: #{tpu_custom_call.1} parent=62 // loop_exit
                  _
              $region63: #{tpu_custom_call.1} parent=47 // pred_fallthru
                _
              // Predicated region
              $region71: #{tpu_custom_call.1} parent=47 // pred_check
                _
              $region72: #{tpu_custom_call.1} parent=47 // pred_check_branch
                %299 = sbr.rel target = $region74
              $region73: #{tpu_custom_call.1} parent=47 // pred_region
                _
              $region74: #{tpu_custom_call.1} parent=47 // pred_fallthru
                _
            $region48: #{tpu_custom_call.1} parent=43 // pred_fallthru
              _
            // Predicated region
            $region49: #{tpu_custom_call.1} parent=43 // pred_check
              _
            $region50: #{tpu_custom_call.1} parent=43 // pred_check_branch
              %261 = sbr.rel target = $region52
            $region51: #{tpu_custom_call.1} parent=43 // pred_region
              %s263 = ssub.s32 256, 1
              loop: start=0, step=1, limit=1
              $region53: #{tpu_custom_call.1} parent=51 // loop_pre_header
                _
              $region54: #{tpu_custom_call.1} parent=51 // loop_header
                %s265 = sphi 0, %s269
                %p266 = scmp.ge.s32.totalorder %s265, 1
                %s270 = sphi %s255, %s255
                %s271 = sphi %s253, %s253
              $region55: #{tpu_custom_call.1} parent=51 // loop_header_branch
                %268 = sbr.rel (%p266) target = $region59
              $region56: #{tpu_custom_call.1} parent=51 // loop_body
                %v272 = vld [vmem:[%s270] sm:%s263]
                %273 = vst [vmem:[%s271] sm:%s263] %v272
                %v274 = vld [vmem:[%s270 + $0x10] sm:%s263]
                %275 = vst [vmem:[%s271 + $0x8] sm:%s263] %v274
                %v276 = vld [vmem:[%s270 + $0x20] sm:%s263]
                %277 = vst [vmem:[%s271 + $0x10] sm:%s263] %v276
                %v278 = vld [vmem:[%s270 + $0x30] sm:%s263]
                %279 = vst [vmem:[%s271 + $0x18] sm:%s263] %v278
              $region57: #{tpu_custom_call.1} parent=51 // loop_footer
                %s269 = sadd.s32 1, %s265
              $region58: #{tpu_custom_call.1} parent=51 // loop_footer_branch
                %264 = sbr.rel target = $region54
              $region59: #{tpu_custom_call.1} parent=51 // loop_exit
                _
            $region52: #{tpu_custom_call.1} parent=43 // pred_fallthru
              _
          $region44: #{tpu_custom_call.1} parent=39 // pred_fallthru
            _
          %300 = vnop
        $region40: #{tpu_custom_call.1} parent=35 // pred_fallthru
          _
        // Predicated region
        $region75: #{tpu_custom_call.1} parent=35 // pred_check
          %p301 = pneg %p66
        $region76: #{tpu_custom_call.1} parent=35 // pred_check_branch
          %303 = sbr.rel (%p301) target = $region78
        $region77: #{tpu_custom_call.1} parent=35 // pred_region
          %s304 = sand.u32 %s56, 1
          %s305 = scalar_lea.sflag [#allocation4], %s304
          %s306 = sand.u32 %s56, 1
          %s307 = smul.addr %s306, 32
          %s308 = scalar_lea.vmem [#allocation3], %s307
          %s310 = ssub.s32 512, 512
          %311 = vsyncadd %s305, %s310
          %s312 = smul.addr %s20, 128
          %s313 = scalar_lea.hbm %s1, %s312
          %s314 = sshll.u32 %s308, 4
          %s315 = int_to_ptr.vmem [resolvable:$true] %s314
          %320 = dma.hbm_to_vmem [thread:$0]  %s313, 512, %s315, %s305, 256, 128, 8
        $region78: #{tpu_custom_call.1} parent=35 // pred_fallthru
          _
      $region36: #{tpu_custom_call.1} parent=5 // pred_fallthru
        _
      %p321 = scmp.le.s32.totalorder 1, %s20
      %p322 = scmp.lt.s32.totalorder %s20, 3
      %p323 = pnand %p321, %p322
      %p324 = pneg %p323
      // Predicated region
      $region79: #{tpu_custom_call.1} parent=5 // pred_check
        _
      $region80: #{tpu_custom_call.1} parent=5 // pred_check_branch
        %326 = sbr.rel (%p323) target = $region82
      $region81: #{tpu_custom_call.1} parent=5 // pred_region
        %s327 = ssub.s32 %s20, 1
        %s328 = sand.u32 %s33, 1
        %s329 = sand.u32 %s33, 1
        %s330 = smul.addr %s329, 32
        %s331 = scalar_lea.vmem [#allocation2], %s330
        // Predicated region
        $region83: #{tpu_custom_call.1} parent=81 // pred_check
          %p332 = pneg %p46
        $region84: #{tpu_custom_call.1} parent=81 // pred_check_branch
          %334 = sbr.rel (%p332) target = $region86
        $region85: #{tpu_custom_call.1} parent=81 // pred_region
          _
        $region86: #{tpu_custom_call.1} parent=81 // pred_fallthru
          _
        %s335 = sand.u32 %s59, 1
        %s336 = scalar_lea.sflag [#allocation4], %s335
        %s337 = sand.u32 %s59, 1
        %s338 = smul.addr %s337, 32
        %s339 = scalar_lea.vmem [#allocation3], %s338
        // Predicated region
        $region87: #{tpu_custom_call.1} parent=81 // pred_check
          %p340 = pneg %p72
        $region88: #{tpu_custom_call.1} parent=81 // pred_check_branch
          %342 = sbr.rel (%p340) target = $region90
        $region89: #{tpu_custom_call.1} parent=81 // pred_region
          %343 = dma.done %s336, 512
        $region90: #{tpu_custom_call.1} parent=81 // pred_fallthru
          _
        // Predicated region
        $region91: #{tpu_custom_call.1} parent=81 // pred_check
          %p344 = pneg %p114
        $region92: #{tpu_custom_call.1} parent=81 // pred_check_branch
          %346 = sbr.rel (%p344) target = $region94
        $region93: #{tpu_custom_call.1} parent=81 // pred_region
          %347 = dma.done [#allocation7], 512
        $region94: #{tpu_custom_call.1} parent=81 // pred_fallthru
          _
        %s348 = sand.u32 %s33, 1
        %s349 = sand.u32 %s33, 1
        %s350 = smul.addr %s349, 32
        %s351 = scalar_lea.vmem [#allocation2], %s350
        %p352 = pneg %p46
        %p353 = pneg %p43
        %s354 = sand.u32 %s59, 1
        %s355 = scalar_lea.sflag [#allocation4], %s354
        %s356 = sand.u32 %s59, 1
        %s357 = smul.addr %s356, 32
        %s358 = scalar_lea.vmem [#allocation3], %s357
        %p359 = pneg %p72
        %p360 = pneg %p69
        %p361 = pneg %p93
        %p362 = pneg %p90
        %p363 = pneg %p114
        %p364 = pneg %p111
        %p365 = pneg %p135
        %p366 = pneg %p132
        %p367 = pneg %p156
        %p368 = pneg %p153
        %p369 = pneg %p177
        %p370 = pneg %p174
        %p371 = pneg %p203
        %p372 = pneg %p200
        %s373 = sand.u32 %s190, 1
        %s374 = scalar_lea.sflag [#allocation5], %s373
        %s375 = sand.u32 %s190, 1
        %s376 = smul.addr %s375, 8
        %s377 = scalar_lea.vmem [#allocation8], %s376
        %v379 = vld [vmem:[%s331] sm:$0xff]
        %v380 = vld [vmem:[%s331 + $0x8] sm:$0xff]
        %v381 = vld [vmem:[%s331 + $0x10] sm:$0xff]
        %v382 = vld [vmem:[%s331 + $0x18] sm:$0xff]
        %v383 = vld [vmem:[%s339] sm:$0xff]
        %v384 = vld [vmem:[%s339 + $0x8] sm:$0xff]
        %v385 = vld [vmem:[%s339 + $0x10] sm:$0xff]
        %v386 = vld [vmem:[%s339 + $0x18] sm:$0xff]
        %v387 = vpack.c.bf16 %v380, %v379
        %v388 = vpack.c.bf16 %v382, %v381
        %v389 = vld [vmem:[%s2] sm:$0xf]
        %v390 = vld [vmem:[%s2 + $0x4] sm:$0xf]
        %v391 = vld [vmem:[%s2 + $0x8] sm:$0xf]
        %v392 = vld [vmem:[%s2 + $0xc] sm:$0xf]
        %v393 = vld [vmem:[%s2 + $0x10] sm:$0xf]
        %v394 = vld [vmem:[%s2 + $0x14] sm:$0xf]
        %v395 = vld [vmem:[%s2 + $0x18] sm:$0xf]
        %v396 = vld [vmem:[%s2 + $0x1c] sm:$0xf]
        %v397 = vpack.c.bf16 %v384, %v383
        %v398 = vpack.c.bf16 %v386, %v385
        %v399 = vld [vmem:[#allocation6] sm:$0xf]
        %v400 = vld [vmem:[#allocation6 + $0x4] sm:$0xf]
        %v401 = vld [vmem:[#allocation6 + $0x8] sm:$0xf]
        %v402 = vld [vmem:[#allocation6 + $0xc] sm:$0xf]
        %v403 = vld [vmem:[#allocation6 + $0x10] sm:$0xf]
        %v404 = vld [vmem:[#allocation6 + $0x14] sm:$0xf]
        %v405 = vld [vmem:[#allocation6 + $0x18] sm:$0xf]
        %v406 = vld [vmem:[#allocation6 + $0x1c] sm:$0xf]
        %v415 = vunpack.c.l.b16 %v399
        %v416 = vunpack.c.l.b16 %v400
        %v417 = vunpack.c.l.b16 %v401
        %v418 = vunpack.c.l.b16 %v402
        %v419 = vunpack.c.l.b16 %v403
        %v420 = vunpack.c.l.b16 %v404
        %v421 = vunpack.c.l.b16 %v405
        %v422 = vunpack.c.l.b16 %v406
        %v423 = vpack.c.b16 %v416, %v415
        %v424 = vpack.c.b16 %v418, %v417
        %v425 = vpack.c.b16 %v420, %v419
        %v426 = vpack.c.b16 %v422, %v421
        %vm431 = vcmask 523264
        %v433 = vsel %vm431, %v397, 0
        %v436 = vsel %vm431, %v398, 0
        %438 = vmatprep.subr.bf16.mxu0 0
        %439 = vmatpush1.bf16.msra.mxu0 0
        %440 = vmatprep.subr.bf16.mxu0 0
        %441 = vmatpush1.bf16.msra.mxu0 0
        %442 = vmatprep.subr.bf16.mxu0 0
        %443 = vmatpush1.bf16.msra.mxu0 0
        %444 = vmatprep.subr.bf16.mxu0 0
        %445 = vmatpush1.bf16.msra.mxu0 0
        %446 = vmatprep.subr.bf16.mxu0 0
        %447 = vmatpush1.bf16.msra.mxu0 %v426
        %448 = vmatprep.subr.bf16.mxu0 0
        %449 = vmatpush1.bf16.msra.mxu0 %v425
        %450 = vmatprep.subr.bf16.mxu0 0
        %451 = vmatpush1.bf16.msra.mxu0 %v424
        %452 = vmatprep.subr.bf16.mxu0 0
        %453 = vmatpush1.bf16.msra.mxu0 %v423
        %454 = vmatprep.subr.bf16.mxu0 0
        %455 = vmatpush2.bf16.msra.mxu0 0
        %456 = vmatprep.subr.bf16.mxu0 0
        %457 = vmatpush2.bf16.msra.mxu0 0
        %458 = vmatprep.subr.bf16.mxu0 0
        %459 = vmatpush2.bf16.msra.mxu0 0
        %460 = vmatprep.subr.bf16.mxu0 0
        %461 = vmatpush2.bf16.msra.mxu0 0
        %462 = vmatprep.subr.bf16.mxu0 0
        %463 = vmatpush2.bf16.msra.mxu0 0
        %464 = vmatprep.subr.bf16.mxu0 0
        %465 = vmatpush2.bf16.msra.mxu0 0
        %466 = vmatprep.subr.bf16.mxu0 0
        %467 = vmatpush2.bf16.msra.mxu0 0
        %468 = vmatprep.subr.bf16.mxu0 0
        %469 = vmatpush2.bf16.msra.mxu0 0
        %470 = vmatprep.mubr.bf16.mxu0 0
        %471 = vmatmul.mubr.bf16.gmra.mxu0 %v433
        %v472 = vpop.f32.mrf.mxu0
        %v473 = vadd.f32 0.0, %v472
        %v474 = vpop.f32.mrf.mxu0
        %v475 = vpop.f32.mrf.mxu0
        %v476 = vadd.f32 0.0, %v475
        %v477 = vpop.f32.mrf.mxu0
        %478 = vmatprep.mubr.bf16.mxu0 0
        %479 = vmatmul.mubr.bf16.gmra.mxu0 %v436
        %v480 = vpop.f32.mrf.mxu0
        %v481 = vadd.f32 0.0, %v480
        %v482 = vpop.f32.mrf.mxu0
        %v483 = vpop.f32.mrf.mxu0
        %v484 = vadd.f32 0.0, %v483
        %v485 = vpop.f32.mrf.mxu0
        %486 = vdwg.mxu0
        %v495 = vunpack.c.l.b16 %v389
        %v496 = vunpack.c.l.b16 %v390
        %v497 = vunpack.c.l.b16 %v391
        %v498 = vunpack.c.l.b16 %v392
        %v499 = vunpack.c.l.b16 %v393
        %v500 = vunpack.c.l.b16 %v394
        %v501 = vunpack.c.l.b16 %v395
        %v502 = vunpack.c.l.b16 %v396
        %v503 = vpack.c.b16 %v496, %v495
        %v504 = vpack.c.b16 %v498, %v497
        %v505 = vpack.c.b16 %v500, %v499
        %v506 = vpack.c.b16 %v502, %v501
        %v512 = vsel %vm431, %v387, 0
        %v515 = vsel %vm431, %v388, 0
        %517 = vmatprep.subr.bf16.mxu0 0
        %518 = vmatpush1.bf16.msra.mxu0 0
        %519 = vmatprep.subr.bf16.mxu0 0
        %520 = vmatpush1.bf16.msra.mxu0 0
        %521 = vmatprep.subr.bf16.mxu0 0
        %522 = vmatpush1.bf16.msra.mxu0 0
        %523 = vmatprep.subr.bf16.mxu0 0
        %524 = vmatpush1.bf16.msra.mxu0 0
        %525 = vmatprep.subr.bf16.mxu0 0
        %526 = vmatpush1.bf16.msra.mxu0 %v506
        %527 = vmatprep.subr.bf16.mxu0 0
        %528 = vmatpush1.bf16.msra.mxu0 %v505
        %529 = vmatprep.subr.bf16.mxu0 0
        %530 = vmatpush1.bf16.msra.mxu0 %v504
        %531 = vmatprep.subr.bf16.mxu0 0
        %532 = vmatpush1.bf16.msra.mxu0 %v503
        %533 = vmatprep.subr.bf16.mxu0 0
        %534 = vmatpush2.bf16.msra.mxu0 0
        %535 = vmatprep.subr.bf16.mxu0 0
        %536 = vmatpush2.bf16.msra.mxu0 0
        %537 = vmatprep.subr.bf16.mxu0 0
        %538 = vmatpush2.bf16.msra.mxu0 0
        %539 = vmatprep.subr.bf16.mxu0 0
        %540 = vmatpush2.bf16.msra.mxu0 0
        %541 = vmatprep.subr.bf16.mxu0 0
        %542 = vmatpush2.bf16.msra.mxu0 0
        %543 = vmatprep.subr.bf16.mxu0 0
        %544 = vmatpush2.bf16.msra.mxu0 0
        %545 = vmatprep.subr.bf16.mxu0 0
        %546 = vmatpush2.bf16.msra.mxu0 0
        %547 = vmatprep.subr.bf16.mxu0 0
        %548 = vmatpush2.bf16.msra.mxu0 0
        %549 = vmatprep.mubr.bf16.mxu0 0
        %550 = vmatmul.mubr.bf16.gmra.mxu0 %v512
        %v551 = vpop.f32.mrf.mxu0
        %v552 = vadd.f32 %v473, %v551
        %v553 = vpop.f32.mrf.mxu0
        %v554 = vpop.f32.mrf.mxu0
        %v555 = vadd.f32 %v476, %v554
        %v556 = vpop.f32.mrf.mxu0
        %557 = vmatprep.mubr.bf16.mxu0 0
        %558 = vmatmul.mubr.bf16.gmra.mxu0 %v515
        %v559 = vpop.f32.mrf.mxu0
        %v560 = vadd.f32 %v481, %v559
        %v561 = vpop.f32.mrf.mxu0
        %v562 = vpop.f32.mrf.mxu0
        %v563 = vadd.f32 %v484, %v562
        %v564 = vpop.f32.mrf.mxu0
        %565 = vdwg.mxu0
        %v566 = vld [vmem:[%s4] sm:$0x1]
        %v568 = vlaneseq
        %v569 = vshrl.u32 %v568, 7
        %v570 = vsub.s32 0, %v569
        %v571 = vrot.slane %v566, %v570
        %v573 = vadd.f32 %v552, %v571
        %v574 = vadd.f32 %v555, %v571
        %v575 = vadd.f32 %v560, %v571
        %v576 = vadd.f32 %v563, %v571
        %v577 = vmax.f32 %v573, 0.0
        %v578 = vmax.f32 %v574, 0.0
        %v579 = vmax.f32 %v575, 0.0
        %v580 = vmax.f32 %v576, 0.0
        %v581 = vpack.c.bf16 %v578, %v577
        %v582 = vpack.c.bf16 %v580, %v579
        %v583 = vld [vmem:[%s5] sm:$0xf]
        %v584 = vld [vmem:[%s5 + $0x4] sm:$0xf]
        %v585 = vld [vmem:[%s5 + $0x8] sm:$0xf]
        %v586 = vld [vmem:[%s5 + $0xc] sm:$0xf]
        %v587 = vld [vmem:[%s5 + $0x10] sm:$0xf]
        %v588 = vld [vmem:[%s5 + $0x14] sm:$0xf]
        %v589 = vld [vmem:[%s5 + $0x18] sm:$0xf]
        %v590 = vld [vmem:[%s5 + $0x1c] sm:$0xf]
        %v591 = vld [vmem:[%s5 + $0x20] sm:$0xf]
        %v592 = vld [vmem:[%s5 + $0x24] sm:$0xf]
        %v593 = vld [vmem:[%s5 + $0x28] sm:$0xf]
        %v594 = vld [vmem:[%s5 + $0x2c] sm:$0xf]
        %v595 = vld [vmem:[%s5 + $0x30] sm:$0xf]
        %v596 = vld [vmem:[%s5 + $0x34] sm:$0xf]
        %v597 = vld [vmem:[%s5 + $0x38] sm:$0xf]
        %v598 = vld [vmem:[%s5 + $0x3c] sm:$0xf]
        %v599 = vld [vmem:[%s6] sm:$0x1]
        %v601 = vlaneseq
        %v602 = vshrl.u32 %v601, 7
        %v603 = vsub.s32 0, %v602
        %v604 = vrot.slane %v599, %v603
        %v622 = vunpack.c.l.b16 %v583
        %v623 = vunpack.c.l.b16 %v584
        %v624 = vunpack.c.l.b16 %v585
        %v625 = vunpack.c.l.b16 %v586
        %v626 = vunpack.c.l.b16 %v587
        %v627 = vunpack.c.l.b16 %v588
        %v628 = vunpack.c.l.b16 %v589
        %v629 = vunpack.c.l.b16 %v590
        %v630 = vunpack.c.l.b16 %v591
        %v631 = vunpack.c.l.b16 %v592
        %v632 = vunpack.c.l.b16 %v593
        %v633 = vunpack.c.l.b16 %v594
        %v634 = vunpack.c.l.b16 %v595
        %v635 = vunpack.c.l.b16 %v596
        %v636 = vunpack.c.l.b16 %v597
        %v637 = vunpack.c.l.b16 %v598
        %v638 = vpack.c.b16 %v623, %v622
        %v639 = vpack.c.b16 %v625, %v624
        %v640 = vpack.c.b16 %v627, %v626
        %v641 = vpack.c.b16 %v629, %v628
        %v642 = vpack.c.b16 %v631, %v630
        %v643 = vpack.c.b16 %v633, %v632
        %v644 = vpack.c.b16 %v635, %v634
        %v645 = vpack.c.b16 %v637, %v636
        %654 = vmatprep.subr.bf16.mxu0 0
        %655 = vmatpush1.bf16.msra.mxu0 %v645
        %656 = vmatprep.subr.bf16.mxu0 0
        %657 = vmatpush1.bf16.msra.mxu0 %v644
        %658 = vmatprep.subr.bf16.mxu0 0
        %659 = vmatpush1.bf16.msra.mxu0 %v643
        %660 = vmatprep.subr.bf16.mxu0 0
        %661 = vmatpush1.bf16.msra.mxu0 %v642
        %662 = vmatprep.subr.bf16.mxu0 0
        %663 = vmatpush1.bf16.msra.mxu0 %v641
        %664 = vmatprep.subr.bf16.mxu0 0
        %665 = vmatpush1.bf16.msra.mxu0 %v640
        %666 = vmatprep.subr.bf16.mxu0 0
        %667 = vmatpush1.bf16.msra.mxu0 %v639
        %668 = vmatprep.subr.bf16.mxu0 0
        %669 = vmatpush1.bf16.msra.mxu0 %v638
        %670 = vmatprep.subr.bf16.mxu0 0
        %671 = vmatpush2.bf16.msra.mxu0 0
        %672 = vmatprep.subr.bf16.mxu0 0
        %673 = vmatpush2.bf16.msra.mxu0 0
        %674 = vmatprep.subr.bf16.mxu0 0
        %675 = vmatpush2.bf16.msra.mxu0 0
        %676 = vmatprep.subr.bf16.mxu0 0
        %677 = vmatpush2.bf16.msra.mxu0 0
        %678 = vmatprep.subr.bf16.mxu0 0
        %679 = vmatpush2.bf16.msra.mxu0 0
        %680 = vmatprep.subr.bf16.mxu0 0
        %681 = vmatpush2.bf16.msra.mxu0 0
        %682 = vmatprep.subr.bf16.mxu0 0
        %683 = vmatpush2.bf16.msra.mxu0 0
        %684 = vmatprep.subr.bf16.mxu0 0
        %685 = vmatpush2.bf16.msra.mxu0 0
        %686 = vmatprep.mubr.bf16.mxu0 0
        %687 = vmatmul.mubr.bf16.gmra.mxu0 %v581
        %v688 = vpop.f32.mrf.mxu0
        %v689 = vadd.f32 %v604, %v688
        %v690 = vpop.f32.mrf.mxu0
        %v691 = vpop.f32.mrf.mxu0
        %v692 = vadd.f32 %v604, %v691
        %v693 = vpop.f32.mrf.mxu0
        %694 = vmatprep.mubr.bf16.mxu0 0
        %695 = vmatmul.mubr.bf16.gmra.mxu0 %v582
        %v696 = vpop.f32.mrf.mxu0
        %v697 = vadd.f32 %v604, %v696
        %v698 = vpop.f32.mrf.mxu0
        %v699 = vpop.f32.mrf.mxu0
        %v700 = vadd.f32 %v604, %v699
        %v701 = vpop.f32.mrf.mxu0
        %702 = vdwg.mxu0
        %v703 = vsel %vm431, %v689, -inf
        %v704 = vsel %vm431, %v692, -inf
        %v705 = vsel %vm431, %v697, -inf
        %v706 = vsel %vm431, %v700, -inf
        %v707 = vmax.f32 %v703, %v704
        %v708 = vmax.f32 %v705, %v706
        %v709 = vmax.f32 %v707, %v708
        %v710 = vsub.f32 %v689, %v709
        %v711 = vsub.f32 %v692, %v709
        %v712 = vsub.f32 %v697, %v709
        %v713 = vsub.f32 %v700, %v709
        %v714 = vmul.f32 %v710, 1.442695
        %v715 = vpow.pop %v714
        %v716 = vmul.f32 %v711, 1.442695
        %v717 = vpow.pop %v716
        %v718 = vmul.f32 %v712, 1.442695
        %v719 = vpow.pop %v718
        %v720 = vmul.f32 %v713, 1.442695
        %v721 = vpow.pop %v720
        %v722 = vsel %vm431, %v715, 0.0
        %v723 = vsel %vm431, %v717, 0.0
        %v724 = vadd.f32 %v722, %v723
        %v725 = vsel %vm431, %v719, 0.0
        %v726 = vadd.f32 %v724, %v725
        %v727 = vsel %vm431, %v721, 0.0
        %v728 = vadd.f32 %v726, %v727
        %v729 = vrcp.pop %v728
        %v730 = vmul.f32 %v715, %v729
        %v731 = vmul.f32 %v717, %v729
        %v732 = vmul.f32 %v719, %v729
        %v733 = vmul.f32 %v721, %v729
        %v734 = vmul.f32 %v730, %v379
        %v735 = vmul.f32 %v731, %v380
        %v736 = vmul.f32 %v732, %v381
        %v737 = vmul.f32 %v733, %v382
        %v738 = vsel %vm431, %v734, 0.0
        %v739 = vsel %vm431, %v735, 0.0
        %v740 = vadd.f32 %v738, %v739
        %v741 = vsel %vm431, %v736, 0.0
        %v742 = vadd.f32 %v740, %v741
        %v743 = vsel %vm431, %v737, 0.0
        %v744 = vadd.f32 %v742, %v743
        %v745 = vmul.f32 %v730, %v383
        %v746 = vmul.f32 %v731, %v384
        %v747 = vmul.f32 %v732, %v385
        %v748 = vmul.f32 %v733, %v386
        %v749 = vsel %vm431, %v745, 0.0
        %v750 = vsel %vm431, %v746, 0.0
        %v751 = vadd.f32 %v749, %v750
        %v752 = vsel %vm431, %v747, 0.0
        %v753 = vadd.f32 %v751, %v752
        %v754 = vsel %vm431, %v748, 0.0
        %v755 = vadd.f32 %v753, %v754
        %757 = vrot.lane.b32.xlu0 %v755, 64
        %v758 = vpop.permute.xlu0 %757
        %v760 = vsel %vm431, %v744, %v758
        %761 = vst [vmem:[%s377] sm:$0xff] %v760
        %s762 = sand.u32 %s190, 1
        %s763 = scalar_lea.sflag [#allocation5], %s762
        %s764 = sand.u32 %s190, 1
        %s765 = smul.addr %s764, 8
        %s766 = scalar_lea.vmem [#allocation8], %s765
        // Predicated region
        $region95: #{tpu_custom_call.1} parent=81 // pred_check
          %p767 = pneg %p200
        $region96: #{tpu_custom_call.1} parent=81 // pred_check_branch
          %769 = sbr.rel (%p767) target = $region98
        $region97: #{tpu_custom_call.1} parent=81 // pred_region
          %s771 = ssub.s32 128, 128
          %772 = vsyncadd %s763, %s771
          %s773 = smul.addr %s25, 128
          %s774 = scalar_lea.hbm %s7, %s773
          %s776 = sshll.u32 %s766, 4
          %s777 = int_to_ptr.vmem [resolvable:$true] %s776
          %779 = dma.vmem_to_hbm [thread:$0]  %s777, 128, %s774, %s763
        $region98: #{tpu_custom_call.1} parent=81 // pred_fallthru
          _
      $region82: #{tpu_custom_call.1} parent=5 // pred_fallthru
        _
      %p780 = scmp.le.s32.totalorder 2, %s20
      // Predicated region
      $region99: #{tpu_custom_call.1} parent=5 // pred_check
        %p781 = pneg %p780
      $region100: #{tpu_custom_call.1} parent=5 // pred_check_branch
        %783 = sbr.rel (%p781) target = $region102
      $region101: #{tpu_custom_call.1} parent=5 // pred_region
        %s784 = ssub.s32 %s20, 2
        // Predicated region
        $region103: #{tpu_custom_call.1} parent=101 // pred_check
          %p785 = pneg %p206
        $region104: #{tpu_custom_call.1} parent=101 // pred_check_branch
          %787 = sbr.rel (%p785) target = $region106
        $region105: #{tpu_custom_call.1} parent=101 // pred_region
          %s788 = sand.u32 %s191, 1
          %s789 = scalar_lea.sflag [#allocation5], %s788
          %s790 = sand.u32 %s191, 1
          %s791 = smul.addr %s790, 8
          %s792 = scalar_lea.vmem [#allocation8], %s791
          %793 = dma.done %s789, 128
        $region106: #{tpu_custom_call.1} parent=101 // pred_fallthru
          _
      $region102: #{tpu_custom_call.1} parent=5 // pred_fallthru
        _
    $region6: #{tpu_custom_call.1} parent=1 // loop_footer
      %s24 = sadd.s32 1, %s20
    $region7: #{tpu_custom_call.1} parent=1 // loop_footer_branch
      %19 = sbr.rel target = $region3
    $region8: #{tpu_custom_call.1} parent=1 // loop_exit
      _
    %794 = vsyncpa [#allocation4], 1
    %s795 = scalar_lea.sflag [#allocation4], 1
    %796 = vsyncpa %s795, 1
    %797 = vsyncpa [#allocation7], 1
    %798 = vsyncpa [#allocation5], 1
    %s799 = scalar_lea.sflag [#allocation5], 1
    %800 = vsyncpa %s799, 1

</llo_original>
